<compile_context>
chip_gen: v7x
topology: tpu7x:2x2x1
jax: 0.10.0
libtpu: 0.0.40
codegen_flags: <defaults>
</compile_context>

<pallas_src>
import math
from functools import partial

import jax
import jax.numpy as jnp
from jax.experimental import pallas as pl
from jax.experimental.pallas import tpu as pltpu

_BN_EPS = 1e-5
_LANE = 128
_SUBLANE = 8
_TM_MAX = 2048                        # diminishing returns beyond ~1-2K rows/tile
_VMEM_BUDGET = 48 * 1024 * 1024       # per-TC working-set budget sized for v7x (64 MiB)
_VMEM_LIMIT = 56 * 1024 * 1024        # scoped-VMEM cap: > 16/32 MiB defaults, < v7x 64 MiB


def _round_up(x, m):
    return (x + m - 1) // m * m


def _elu(x):
    # ELU with alpha=1: x if x > 0 else exp(x) - 1
    return jnp.where(x > 0, x, jnp.exp(x) - 1.0)


def _choose_tm(M, n_in_p, n_hid_p, n_out_p):
    """Rows per M-tile, derived from the v7x-safe VMEM budget."""
    # bf16 weights, counted x2 (pipeline buffering) even though index_map is constant.
    weight_bytes = 2 * 2 * (n_in_p * n_hid_p + n_hid_p * n_out_p)
    avail = max(_VMEM_BUDGET - weight_bytes - 2 * 1024 * 1024, 1 * 1024 * 1024)
    # per-row VMEM: x tile (bf16, double-buffered) + out tile (f32, double-buffered)
    #               + h temp (f32) + y temp (f32)
    per_row = 2 * n_in_p * 2 + 2 * n_out_p * 4 + n_hid_p * 4 + n_out_p * 4
    tm = int(avail // per_row)
    tm = max(_SUBLANE, min(tm, _TM_MAX))
    m_rows = _round_up(M, _SUBLANE)
    if m_rows >= 2 * _SUBLANE:
        # ensure >= 2 grid tiles so both v7x TensorCores get work on small batches
        tm = min(tm, _round_up((m_rows + 1) // 2, _SUBLANE))
    tm = min(tm, m_rows)
    return _round_up(tm, _SUBLANE)


def _mlp_tile(x_ref, w1_ref, b1_ref, w2_ref, b2_ref):
    """ELU(ELU(x @ W1 + b1) @ W2 + b2) for one (tm, n_in_p) tile; f32 result.

    MXU operands are bf16 (v6e/v7x friendly); accumulation and elementwise math
    stay f32 (v5e has no bf16 VALU/EUP).
    """
    h = jnp.dot(x_ref[...], w1_ref[...],
                preferred_element_type=jnp.float32) + b1_ref[...]
    h = _elu(h)
    # dropout: identity (eval semantics)
    # TODO(synk): training-mode F.dropout is stochastic; left as identity.
    y = jnp.dot(h.astype(jnp.bfloat16), w2_ref[...],
                preferred_element_type=jnp.float32) + b2_ref[...]
    return _elu(y)


def _stats_kernel(x_ref, w1_ref, b1_ref, w2_ref, b2_ref, stats_ref,
                  *, tm, m_valid, needs_mask):
    """Pass A: fused fc1+ELU+fc2+ELU; emit per-tile BN partial sums only."""
    y = _mlp_tile(x_ref, w1_ref, b1_ref, w2_ref, b2_ref)       # (tm, n_out_p) f32
    stats_ref[0:1, :] = jnp.sum(y, axis=0, keepdims=True)
    stats_ref[1:2, :] = jnp.sum(y * y, axis=0, keepdims=True)

    if needs_mask:
        # Only the last tile contains zero-padded rows; overwrite with masked sums there.
        @pl.when(pl.program_id(0) == pl.num_programs(0) - 1)
        def _():
            row = (jax.lax.broadcasted_iota(jnp.int32, (tm, 1), 0)
                   + pl.program_id(0) * tm)
            ym = y * (row < m_valid).astype(jnp.float32)
            stats_ref[0:1, :] = jnp.sum(ym, axis=0, keepdims=True)
            stats_ref[1:2, :] = jnp.sum(ym * ym, axis=0, keepdims=True)


def _apply_kernel(x_ref, w1_ref, b1_ref, w2_ref, b2_ref,
                  scale_ref, shift_ref, o_ref):
    """Pass B: recompute y from x, apply folded BN affine, write final output."""
    y = _mlp_tile(x_ref, w1_ref, b1_ref, w2_ref, b2_ref)
    o_ref[...] = y * scale_ref[...] + shift_ref[...]


@jax.jit
def mlp_forward(x, w1, b1, w2, b2, gamma, beta):
    """x: (B, N, n_in) float32 -> (B, N, n_out) float32."""
    B, N, n_in = x.shape
    n_hid = w1.shape[1]
    n_out = w2.shape[1]
    M = B * N

    # ---- padding / layout ----------------------------------------------------
    # 128-lane alignment; bump to 256 only if a compute-bound profile shows the
    # v6e/v7x 256-wide MXU is the binding slot (irrelevant while memory-bound).
    n_in_p = _round_up(n_in, _LANE)
    n_hid_p = _round_up(n_hid, _LANE)
    n_out_p = _round_up(n_out, _LANE)

    tm = _choose_tm(M, n_in_p, n_hid_p, n_out_p)
    m_pad = _round_up(M, tm)
    n_tiles = m_pad // tm
    needs_mask = (m_pad != M)

    x2 = jnp.pad(x.reshape(M, n_in), ((0, m_pad - M), (0, n_in_p - n_in)))
    x2 = x2.astype(jnp.bfloat16)                                  # halves x DMA traffic
    w1p = jnp.pad(w1, ((0, n_in_p - n_in), (0, n_hid_p - n_hid))).astype(jnp.bfloat16)
    w2p = jnp.pad(w2, ((0, n_hid_p - n_hid), (0, n_out_p - n_out))).astype(jnp.bfloat16)
    b1p = jnp.pad(b1.reshape(1, n_hid), ((0, 0), (0, n_hid_p - n_hid)))
    b2p = jnp.pad(b2.reshape(1, n_out), ((0, 0), (0, n_out_p - n_out)))

    weight_bytes = (w1p.size + w2p.size) * 2 + (b1p.size + b2p.size) * 4
    mm_flops = 2 * m_pad * (n_in_p * n_hid_p + n_hid_p * n_out_p)
    trans = m_pad * (n_hid_p + n_out_p)

    shared_in_specs = [
        pl.BlockSpec((tm, n_in_p), lambda i: (i, 0)),
        pl.BlockSpec((n_in_p, n_hid_p), lambda i: (0, 0)),   # VMEM-resident weight
        pl.BlockSpec((1, n_hid_p), lambda i: (0, 0)),
        pl.BlockSpec((n_hid_p, n_out_p), lambda i: (0, 0)),  # VMEM-resident weight
        pl.BlockSpec((1, n_out_p), lambda i: (0, 0)),
    ]
    cparams = pltpu.CompilerParams(
        dimension_semantics=("parallel",),
        vmem_limit_bytes=_VMEM_LIMIT,
    )

    # ---- pass A: matmuls + ELU -> per-tile BN partial stats (no y writeback) --
    stats = pl.pallas_call(
        partial(_stats_kernel, tm=tm, m_valid=M, needs_mask=needs_mask),
        out_shape=jax.ShapeDtypeStruct((n_tiles, 2, n_out_p), jnp.float32),
        grid=(n_tiles,),
        in_specs=shared_in_specs,
        out_specs=pl.BlockSpec((None, 2, n_out_p), lambda i: (i, 0, 0)),
        compiler_params=cparams,
        cost_estimate=pl.CostEstimate(
            flops=mm_flops,
            transcendentals=trans,
            bytes_accessed=x2.size * 2 + weight_bytes + n_tiles * 2 * n_out_p * 4,
        ),
    )(x2, w1p, b1p, w2p, b2p)

    # ---- tiny per-column stats reduction + folded BN affine -------------------
    col_sum = jnp.sum(stats[:, 0, :], axis=0)                    # (n_out_p,)
    col_sq = jnp.sum(stats[:, 1, :], axis=0)
    mean = col_sum / M
    # one-pass biased variance E[y^2] - mean^2; fine in f32 for O(1)-scale ELU outputs
    var = jnp.maximum(col_sq / M - mean * mean, 0.0)
    inv_std = jax.lax.rsqrt(var + _BN_EPS)
    gamma_p = jnp.pad(gamma.reshape(-1), (0, n_out_p - n_out))
    beta_p = jnp.pad(beta.reshape(-1), (0, n_out_p - n_out))
    scale = (gamma_p * inv_std).reshape(1, n_out_p)
    shift = (beta_p - mean * gamma_p * inv_std).reshape(1, n_out_p)

    # ---- pass B: recompute y and apply folded BN, write final output ---------
    out_pad = pl.pallas_call(
        _apply_kernel,
        out_shape=jax.ShapeDtypeStruct((m_pad, n_out_p), jnp.float32),
        grid=(n_tiles,),
        in_specs=shared_in_specs + [
            pl.BlockSpec((1, n_out_p), lambda i: (0, 0)),
            pl.BlockSpec((1, n_out_p), lambda i: (0, 0)),
        ],
        out_specs=pl.BlockSpec((tm, n_out_p), lambda i: (i, 0)),
        compiler_params=cparams,
        cost_estimate=pl.CostEstimate(
            flops=mm_flops + 2 * m_pad * n_out_p,
            transcendentals=trans,
            bytes_accessed=(x2.size * 2 + weight_bytes + 2 * n_out_p * 4
                            + m_pad * n_out_p * 4),
        ),
    )(x2, w1p, b1p, w2p, b2p, scale, shift)

    return out_pad[:M, :n_out].reshape(B, N, n_out)


def init_params(key, n_in, n_hid, n_out):
    """Matches MLP.init_weights(): xavier_normal_ weights, bias=0.1, BN gamma=1, beta=0."""
    k1, k2 = jax.random.split(key)
    std1 = math.sqrt(2.0 / (n_in + n_hid))
    std2 = math.sqrt(2.0 / (n_hid + n_out))
    # PyTorch Linear stores weight as (out, in); we keep the transposed (in, out) layout.
    w1 = jax.random.normal(k1, (n_in, n_hid), jnp.float32) * std1
    b1 = jnp.full((n_hid,), 0.1, jnp.float32)
    w2 = jax.random.normal(k2, (n_hid, n_out), jnp.float32) * std2
    b2 = jnp.full((n_out,), 0.1, jnp.float32)
    gamma = jnp.ones((n_out,), jnp.float32)
    beta = jnp.zeros((n_out,), jnp.float32)
    return w1, b1, w2, b2, gamma, beta


def _reference(x, w1, b1, w2, b2, gamma, beta):
    """Pure-JAX reference mirroring the kernel's bf16 MXU operands + f32 accumulation."""
    B, N, _ = x.shape
    x2 = x.reshape(B * N, -1)
    h = _elu(jnp.dot(x2.astype(jnp.bfloat16), w1.astype(jnp.bfloat16),
                     preferred_element_type=jnp.float32) + b1)
    y = _elu(jnp.dot(h.astype(jnp.bfloat16), w2.astype(jnp.bfloat16),
                     preferred_element_type=jnp.float32) + b2)
    mean = y.mean(0, keepdims=True)
    var = ((y - mean) ** 2).mean(0, keepdims=True)
    out = gamma * (y - mean) / jnp.sqrt(var + _BN_EPS) + beta
    return out.reshape(B, N, -1)


if __name__ == "__main__":
    B, N = 2, 8            # batch=2, tokens=8
    n_in, n_hid, n_out = 16, 32, 16

    key = jax.random.PRNGKey(0)
    kx, kp = jax.random.split(key)
    x = jax.random.normal(kx, (B, N, n_in), jnp.float32)
    params = init_params(kp, n_in, n_hid, n_out)

    out = jax.block_until_ready(mlp_forward(x, *params))
    ref = _reference(x, *params)

    assert out.shape == (B, N, n_out)
    assert jnp.allclose(out, ref, atol=2e-3, rtol=2e-3), "mismatch vs JAX reference"

    print("KERNEL_OK")
</pallas_src>

<mosaic_0001>
module attributes {stable_mosaic.version = 11 : i64} {
  func.func @_stats_kernel(%arg0: i32, %arg1: memref<8x128xbf16, #tpu.memory_space<vmem>>, %arg2: memref<128x128xbf16, #tpu.memory_space<vmem>>, %arg3: memref<1x128xf32, #tpu.memory_space<vmem>>, %arg4: memref<128x128xbf16, #tpu.memory_space<vmem>>, %arg5: memref<1x128xf32, #tpu.memory_space<vmem>>, %arg6: memref<1x2x128xf32, #tpu.memory_space<vmem>>) attributes {dimension_semantics = [#tpu.dimension_semantics<parallel>], iteration_bounds = array<i64: 2>, scalar_prefetch = 0 : i64, scratch_operands = 0 : i64, tpu.core_type = #tpu.core_type<tc>, window_params = [{transform_indices = @transform_0, window_bounds = array<i64: 8, 128>}, {pipeline_mode = #tpu.pipeline_mode<synchronous>, transform_indices = @transform_1, window_bounds = array<i64: 128, 128>}, {pipeline_mode = #tpu.pipeline_mode<synchronous>, transform_indices = @transform_2, window_bounds = array<i64: 1, 128>}, {pipeline_mode = #tpu.pipeline_mode<synchronous>, transform_indices = @transform_3, window_bounds = array<i64: 128, 128>}, {pipeline_mode = #tpu.pipeline_mode<synchronous>, transform_indices = @transform_4, window_bounds = array<i64: 1, 128>}, {transform_indices = @transform_5, window_bounds = array<i64: 1, 2, 128>}]} {
    %c0 = arith.constant 0 : index
    %c0_0 = arith.constant 0 : index
    %0 = vector.load %arg1[%c0, %c0_0] : memref<8x128xbf16, #tpu.memory_space<vmem>>, vector<8x128xbf16>
    %c0_1 = arith.constant 0 : index
    %c0_2 = arith.constant 0 : index
    %1 = vector.load %arg2[%c0_1, %c0_2] : memref<128x128xbf16, #tpu.memory_space<vmem>>, vector<128x128xbf16>
    %cst = arith.constant dense<0.000000e+00> : vector<8x128xf32>
    %2 = tpu.matmul %0, %1, %cst {dimension_numbers = #tpu.dot_dimension_numbers<[1], [0], [0], [1], [0, 0, 1, 1], [], []>} : vector<8x128xbf16>, vector<128x128xbf16>, vector<8x128xf32> -> vector<8x128xf32>
    %c0_3 = arith.constant 0 : index
    %c0_4 = arith.constant 0 : index
    %3 = vector.load %arg3[%c0_3, %c0_4] : memref<1x128xf32, #tpu.memory_space<vmem>>, vector<1x128xf32>
    %4 = vector.broadcast %3 : vector<1x128xf32> to vector<8x128xf32>
    %5 = arith.addf %2, %4 : vector<8x128xf32>
    %cst_5 = arith.constant 0.000000e+00 : f32
    %6 = vector.broadcast %cst_5 : f32 to vector<8x128xf32>
    %7 = arith.cmpf ogt, %5, %6 : vector<8x128xf32>
    %8 = math.exp %5 : vector<8x128xf32>
    %cst_6 = arith.constant 1.000000e+00 : f32
    %9 = vector.broadcast %cst_6 : f32 to vector<8x128xf32>
    %10 = arith.subf %8, %9 : vector<8x128xf32>
    %11 = arith.select %7, %5, %10 : vector<8x128xi1>, vector<8x128xf32>
    %12 = arith.truncf %11 : vector<8x128xf32> to vector<8x128xbf16>
    %c0_7 = arith.constant 0 : index
    %c0_8 = arith.constant 0 : index
    %13 = vector.load %arg4[%c0_7, %c0_8] : memref<128x128xbf16, #tpu.memory_space<vmem>>, vector<128x128xbf16>
    %cst_9 = arith.constant dense<0.000000e+00> : vector<8x128xf32>
    %14 = tpu.matmul %12, %13, %cst_9 {dimension_numbers = #tpu.dot_dimension_numbers<[1], [0], [0], [1], [0, 0, 1, 1], [], []>} : vector<8x128xbf16>, vector<128x128xbf16>, vector<8x128xf32> -> vector<8x128xf32>
    %c0_10 = arith.constant 0 : index
    %c0_11 = arith.constant 0 : index
    %15 = vector.load %arg5[%c0_10, %c0_11] : memref<1x128xf32, #tpu.memory_space<vmem>>, vector<1x128xf32>
    %16 = vector.broadcast %15 : vector<1x128xf32> to vector<8x128xf32>
    %17 = arith.addf %14, %16 : vector<8x128xf32>
    %cst_12 = arith.constant 0.000000e+00 : f32
    %18 = vector.broadcast %cst_12 : f32 to vector<8x128xf32>
    %19 = arith.cmpf ogt, %17, %18 : vector<8x128xf32>
    %20 = math.exp %17 : vector<8x128xf32>
    %cst_13 = arith.constant 1.000000e+00 : f32
    %21 = vector.broadcast %cst_13 : f32 to vector<8x128xf32>
    %22 = arith.subf %20, %21 : vector<8x128xf32>
    %23 = arith.select %19, %17, %22 : vector<8x128xi1>, vector<8x128xf32>
    %cst_14 = arith.constant dense<0.000000e+00> : vector<128xf32>
    %24 = vector.multi_reduction <add>, %23, %cst_14 [0] : vector<8x128xf32> to vector<128xf32>
    %25 = vector.shape_cast %24 : vector<128xf32> to vector<1x128xf32>
    %c0_15 = arith.constant 0 : index
    %c0_16 = arith.constant 0 : index
    %c0_17 = arith.constant 0 : index
    %26 = vector.load %arg6[%c0_15, %c0_16, %c0_17] : memref<1x2x128xf32, #tpu.memory_space<vmem>>, vector<1x1x128xf32>
    %27 = vector.shape_cast %26 : vector<1x1x128xf32> to vector<1x128xf32>
    %28 = vector.shape_cast %25 : vector<1x128xf32> to vector<1x1x128xf32>
    tpu.vector_store %arg6[%c0_15, %c0_16, %c0_17], %28 {strides = array<i32>} : memref<1x2x128xf32, #tpu.memory_space<vmem>>, vector<1x1x128xf32>,
    %29 = arith.mulf %23, %23 : vector<8x128xf32>
    %cst_18 = arith.constant dense<0.000000e+00> : vector<128xf32>
    %30 = vector.multi_reduction <add>, %29, %cst_18 [0] : vector<8x128xf32> to vector<128xf32>
    %31 = vector.shape_cast %30 : vector<128xf32> to vector<1x128xf32>
    %c0_19 = arith.constant 0 : index
    %c1 = arith.constant 1 : index
    %c0_20 = arith.constant 0 : index
    %32 = vector.load %arg6[%c0_19, %c1, %c0_20] : memref<1x2x128xf32, #tpu.memory_space<vmem>>, vector<1x1x128xf32>
    %33 = vector.shape_cast %32 : vector<1x1x128xf32> to vector<1x128xf32>
    %34 = vector.shape_cast %31 : vector<1x128xf32> to vector<1x1x128xf32>
    tpu.vector_store %arg6[%c0_19, %c1, %c0_20], %34 {strides = array<i32>} : memref<1x2x128xf32, #tpu.memory_space<vmem>>, vector<1x1x128xf32>,
    return
  }
  func.func @transform_0(%arg0: i32) -> (i32, i32) {
    %c0_i32 = arith.constant 0 : i32
    %c0_i32_0 = arith.constant 0 : i32
    return %arg0, %c0_i32 : i32, i32
  }
  func.func @transform_1(%arg0: i32) -> (i32, i32) {
    %c0_i32 = arith.constant 0 : i32
    %c0_i32_0 = arith.constant 0 : i32
    %c0_i32_1 = arith.constant 0 : i32
    return %c0_i32, %c0_i32_0 : i32, i32
  }
  func.func @transform_2(%arg0: i32) -> (i32, i32) {
    %c0_i32 = arith.constant 0 : i32
    %c0_i32_0 = arith.constant 0 : i32
    %c0_i32_1 = arith.constant 0 : i32
    return %c0_i32, %c0_i32_0 : i32, i32
  }
  func.func @transform_3(%arg0: i32) -> (i32, i32) {
    %c0_i32 = arith.constant 0 : i32
    %c0_i32_0 = arith.constant 0 : i32
    %c0_i32_1 = arith.constant 0 : i32
    return %c0_i32, %c0_i32_0 : i32, i32
  }
  func.func @transform_4(%arg0: i32) -> (i32, i32) {
    %c0_i32 = arith.constant 0 : i32
    %c0_i32_0 = arith.constant 0 : i32
    %c0_i32_1 = arith.constant 0 : i32
    return %c0_i32, %c0_i32_0 : i32, i32
  }
  func.func @transform_5(%arg0: i32) -> (i32, i32, i32) {
    %c0_i32 = arith.constant 0 : i32
    %c0_i32_0 = arith.constant 0 : i32
    %c0_i32_1 = arith.constant 0 : i32
    return %arg0, %c0_i32, %c0_i32_0 : i32, i32, i32
  }
}

module attributes {stable_mosaic.version = 11 : i64} {
  func.func @_apply_kernel(%arg0: i32, %arg1: memref<8x128xbf16, #tpu.memory_space<vmem>>, %arg2: memref<128x128xbf16, #tpu.memory_space<vmem>>, %arg3: memref<1x128xf32, #tpu.memory_space<vmem>>, %arg4: memref<128x128xbf16, #tpu.memory_space<vmem>>, %arg5: memref<1x128xf32, #tpu.memory_space<vmem>>, %arg6: memref<1x128xf32, #tpu.memory_space<vmem>>, %arg7: memref<1x128xf32, #tpu.memory_space<vmem>>, %arg8: memref<8x128xf32, #tpu.memory_space<vmem>>) attributes {dimension_semantics = [#tpu.dimension_semantics<parallel>], iteration_bounds = array<i64: 2>, scalar_prefetch = 0 : i64, scratch_operands = 0 : i64, tpu.core_type = #tpu.core_type<tc>, window_params = [{transform_indices = @transform_0, window_bounds = array<i64: 8, 128>}, {pipeline_mode = #tpu.pipeline_mode<synchronous>, transform_indices = @transform_1, window_bounds = array<i64: 128, 128>}, {pipeline_mode = #tpu.pipeline_mode<synchronous>, transform_indices = @transform_2, window_bounds = array<i64: 1, 128>}, {pipeline_mode = #tpu.pipeline_mode<synchronous>, transform_indices = @transform_3, window_bounds = array<i64: 128, 128>}, {pipeline_mode = #tpu.pipeline_mode<synchronous>, transform_indices = @transform_4, window_bounds = array<i64: 1, 128>}, {pipeline_mode = #tpu.pipeline_mode<synchronous>, transform_indices = @transform_5, window_bounds = array<i64: 1, 128>}, {pipeline_mode = #tpu.pipeline_mode<synchronous>, transform_indices = @transform_6, window_bounds = array<i64: 1, 128>}, {transform_indices = @transform_7, window_bounds = array<i64: 8, 128>}]} {
    %c0 = arith.constant 0 : index
    %c0_0 = arith.constant 0 : index
    %0 = vector.load %arg1[%c0, %c0_0] : memref<8x128xbf16, #tpu.memory_space<vmem>>, vector<8x128xbf16>
    %c0_1 = arith.constant 0 : index
    %c0_2 = arith.constant 0 : index
    %1 = vector.load %arg2[%c0_1, %c0_2] : memref<128x128xbf16, #tpu.memory_space<vmem>>, vector<128x128xbf16>
    %cst = arith.constant dense<0.000000e+00> : vector<8x128xf32>
    %2 = tpu.matmul %0, %1, %cst {dimension_numbers = #tpu.dot_dimension_numbers<[1], [0], [0], [1], [0, 0, 1, 1], [], []>} : vector<8x128xbf16>, vector<128x128xbf16>, vector<8x128xf32> -> vector<8x128xf32>
    %c0_3 = arith.constant 0 : index
    %c0_4 = arith.constant 0 : index
    %3 = vector.load %arg3[%c0_3, %c0_4] : memref<1x128xf32, #tpu.memory_space<vmem>>, vector<1x128xf32>
    %4 = vector.broadcast %3 : vector<1x128xf32> to vector<8x128xf32>
    %5 = arith.addf %2, %4 : vector<8x128xf32>
    %cst_5 = arith.constant 0.000000e+00 : f32
    %6 = vector.broadcast %cst_5 : f32 to vector<8x128xf32>
    %7 = arith.cmpf ogt, %5, %6 : vector<8x128xf32>
    %8 = math.exp %5 : vector<8x128xf32>
    %cst_6 = arith.constant 1.000000e+00 : f32
    %9 = vector.broadcast %cst_6 : f32 to vector<8x128xf32>
    %10 = arith.subf %8, %9 : vector<8x128xf32>
    %11 = arith.select %7, %5, %10 : vector<8x128xi1>, vector<8x128xf32>
    %12 = arith.truncf %11 : vector<8x128xf32> to vector<8x128xbf16>
    %c0_7 = arith.constant 0 : index
    %c0_8 = arith.constant 0 : index
    %13 = vector.load %arg4[%c0_7, %c0_8] : memref<128x128xbf16, #tpu.memory_space<vmem>>, vector<128x128xbf16>
    %cst_9 = arith.constant dense<0.000000e+00> : vector<8x128xf32>
    %14 = tpu.matmul %12, %13, %cst_9 {dimension_numbers = #tpu.dot_dimension_numbers<[1], [0], [0], [1], [0, 0, 1, 1], [], []>} : vector<8x128xbf16>, vector<128x128xbf16>, vector<8x128xf32> -> vector<8x128xf32>
    %c0_10 = arith.constant 0 : index
    %c0_11 = arith.constant 0 : index
    %15 = vector.load %arg5[%c0_10, %c0_11] : memref<1x128xf32, #tpu.memory_space<vmem>>, vector<1x128xf32>
    %16 = vector.broadcast %15 : vector<1x128xf32> to vector<8x128xf32>
    %17 = arith.addf %14, %16 : vector<8x128xf32>
    %cst_12 = arith.constant 0.000000e+00 : f32
    %18 = vector.broadcast %cst_12 : f32 to vector<8x128xf32>
    %19 = arith.cmpf ogt, %17, %18 : vector<8x128xf32>
    %20 = math.exp %17 : vector<8x128xf32>
    %cst_13 = arith.constant 1.000000e+00 : f32
    %21 = vector.broadcast %cst_13 : f32 to vector<8x128xf32>
    %22 = arith.subf %20, %21 : vector<8x128xf32>
    %23 = arith.select %19, %17, %22 : vector<8x128xi1>, vector<8x128xf32>
    %c0_14 = arith.constant 0 : index
    %c0_15 = arith.constant 0 : index
    %24 = vector.load %arg6[%c0_14, %c0_15] : memref<1x128xf32, #tpu.memory_space<vmem>>, vector<1x128xf32>
    %25 = vector.broadcast %24 : vector<1x128xf32> to vector<8x128xf32>
    %26 = arith.mulf %23, %25 : vector<8x128xf32>
    %c0_16 = arith.constant 0 : index
    %c0_17 = arith.constant 0 : index
    %27 = vector.load %arg7[%c0_16, %c0_17] : memref<1x128xf32, #tpu.memory_space<vmem>>, vector<1x128xf32>
    %28 = vector.broadcast %27 : vector<1x128xf32> to vector<8x128xf32>
    %29 = arith.addf %26, %28 : vector<8x128xf32>
    %c0_18 = arith.constant 0 : index
    %c0_19 = arith.constant 0 : index
    %30 = vector.load %arg8[%c0_18, %c0_19] : memref<8x128xf32, #tpu.memory_space<vmem>>, vector<8x128xf32>
    tpu.vector_store %arg8[%c0_18, %c0_19], %29 {strides = array<i32>} : memref<8x128xf32, #tpu.memory_space<vmem>>, vector<8x128xf32>,
    return
  }
  func.func @transform_0(%arg0: i32) -> (i32, i32) {
    %c0_i32 = arith.constant 0 : i32
    %c0_i32_0 = arith.constant 0 : i32
    return %arg0, %c0_i32 : i32, i32
  }
  func.func @transform_1(%arg0: i32) -> (i32, i32) {
    %c0_i32 = arith.constant 0 : i32
    %c0_i32_0 = arith.constant 0 : i32
    %c0_i32_1 = arith.constant 0 : i32
    return %c0_i32, %c0_i32_0 : i32, i32
  }
  func.func @transform_2(%arg0: i32) -> (i32, i32) {
    %c0_i32 = arith.constant 0 : i32
    %c0_i32_0 = arith.constant 0 : i32
    %c0_i32_1 = arith.constant 0 : i32
    return %c0_i32, %c0_i32_0 : i32, i32
  }
  func.func @transform_3(%arg0: i32) -> (i32, i32) {
    %c0_i32 = arith.constant 0 : i32
    %c0_i32_0 = arith.constant 0 : i32
    %c0_i32_1 = arith.constant 0 : i32
    return %c0_i32, %c0_i32_0 : i32, i32
  }
  func.func @transform_4(%arg0: i32) -> (i32, i32) {
    %c0_i32 = arith.constant 0 : i32
    %c0_i32_0 = arith.constant 0 : i32
    %c0_i32_1 = arith.constant 0 : i32
    return %c0_i32, %c0_i32_0 : i32, i32
  }
  func.func @transform_5(%arg0: i32) -> (i32, i32) {
    %c0_i32 = arith.constant 0 : i32
    %c0_i32_0 = arith.constant 0 : i32
    %c0_i32_1 = arith.constant 0 : i32
    return %c0_i32, %c0_i32_0 : i32, i32
  }
  func.func @transform_6(%arg0: i32) -> (i32, i32) {
    %c0_i32 = arith.constant 0 : i32
    %c0_i32_0 = arith.constant 0 : i32
    %c0_i32_1 = arith.constant 0 : i32
    return %c0_i32, %c0_i32_0 : i32, i32
  }
  func.func @transform_7(%arg0: i32) -> (i32, i32) {
    %c0_i32 = arith.constant 0 : i32
    %c0_i32_0 = arith.constant 0 : i32
    return %arg0, %c0_i32 : i32, i32
  }
}

</mosaic_0001>

<llo_original>
// kernel: mlp_forward.3
$region0: #{mlp_forward.3}
  #allocation0 [shape = 'u32[]', space=smem, size = 0x4, offset = 0x4, fixed_abs, tag = 'smem constant byte address 0x4 - core index']
  #allocation1 [shape = 'u32[144,128]{1,0:T(1,128)}', space=vmem, size = 0x12000, scoped, tag = 'internal scratch']
  %s0 = inlined_call_operand.vmem [shape: bf16[16,128], index: 0, kind: input, shape index: {}]
  %s1 = inlined_call_operand.vmem [shape: bf16[128,128], index: 1, kind: input, shape index: {}]
  %s2 = inlined_call_operand.vmem [shape: f32[1,128], index: 2, kind: input, shape index: {}]
  %s3 = inlined_call_operand.vmem [shape: bf16[128,128], index: 3, kind: input, shape index: {}]
  %s4 = inlined_call_operand.vmem [shape: f32[1,128], index: 4, kind: input, shape index: {}]
  %s5 = inlined_call_operand.vmem [shape: f32[1,128], index: 5, kind: input, shape index: {}]
  %s6 = inlined_call_operand.vmem [shape: f32[1,128], index: 6, kind: input, shape index: {}]
  %s7 = inlined_call_operand.vmem [shape: f32[16,128], index: 7, kind: output, shape index: {}]
  %s8 = sld [smem:[#allocation0]]
  $region61: #{mlp_forward.3} parent=0
    _
  %s10 = ssub.s32 1, %s8
  %s11 = scalar_select 0, %s10, %s8
  loop: start=0, step=1, limit=4
  $region2: #{mlp_forward.3} parent=0 // loop_pre_header
    _
  $region3: #{mlp_forward.3} parent=0 // loop_header
    %s13 = sphi 0, %s17
    %p14 = scmp.ge.s32.totalorder %s13, 4
    %s23 = sphi 0, %s25
    %s26 = sphi 0, %s23
    %s27 = sphi 0, %s26
    %s43 = sphi 0, %s27
    %s47 = sphi 0, %s47
    %s49 = sphi 0, %s47
    %s50 = sphi 0, %s49
    %s64 = sphi 0, %s50
    %s68 = sphi 0, %s68
    %s70 = sphi 0, %s68
    %s71 = sphi 0, %s70
    %s85 = sphi 0, %s71
    %s89 = sphi 0, %s89
    %s91 = sphi 0, %s89
    %s92 = sphi 0, %s91
    %s106 = sphi 0, %s92
    %s110 = sphi 0, %s110
    %s112 = sphi 0, %s110
    %s113 = sphi 0, %s112
    %s127 = sphi 0, %s113
    %s131 = sphi 0, %s131
    %s133 = sphi 0, %s131
    %s134 = sphi 0, %s133
    %s148 = sphi 0, %s134
    %s152 = sphi 0, %s152
    %s154 = sphi 0, %s152
    %s155 = sphi 0, %s154
    %s169 = sphi 0, %s155
    %s175 = sphi 0, %s177
    %s178 = sphi 0, %s175
    %s179 = sphi 0, %s178
    %s195 = sphi 0, %s179
  $region4: #{mlp_forward.3} parent=0 // loop_header_branch
    %16 = sbr.rel (%p14) target = $region8
  $region5: #{mlp_forward.3} parent=0 // loop_body
    %s18 = ssub.s32 %s13, 1
    %s19 = ssub.s32 %s13, 2
    %s20 = sadd.s32 %s13, 1
    %s21 = ssub.s32 %s13, %s20
    %p22 = scmp.eq.s32.totalorder %s21, 0
    %s24 = sadd.s32 %s23, 1
    %s25 = scalar_select %p22, %s23, %s24
    %p28 = pneg %p22
    %p29 = scmp.eq.s32.totalorder %s13, 1
    %p30 = por %p28, %p29
    %p31 = scmp.ne.s32.totalorder %s23, %s26
    %p32 = scmp.eq.s32.totalorder %s13, 0
    %p33 = por %p31, %p32
    %p34 = scmp.ne.s32.totalorder %s23, %s26
    %p35 = scmp.eq.s32.totalorder %s18, 1
    %p36 = por %p34, %p35
    %p37 = scmp.ne.s32.totalorder %s26, %s27
    %p38 = scmp.eq.s32.totalorder %s18, 0
    %p39 = por %p37, %p38
    %p40 = scmp.ne.s32.totalorder %s26, %s27
    %p41 = scmp.eq.s32.totalorder %s19, 1
    %p42 = por %p40, %p41
    %p44 = scmp.ne.s32.totalorder %s27, %s43
    %p45 = scmp.eq.s32.totalorder %s19, 0
    %p46 = por %p44, %p45
    %s48 = sadd.s32 %s47, 1
    %p51 = scmp.eq.s32.totalorder %s13, 1
    %p52 = scmp.ne.s32.totalorder %s47, %s49
    %p53 = scmp.eq.s32.totalorder %s13, 0
    %p54 = por %p52, %p53
    %p55 = scmp.ne.s32.totalorder %s47, %s49
    %p56 = scmp.eq.s32.totalorder %s18, 1
    %p57 = por %p55, %p56
    %p58 = scmp.ne.s32.totalorder %s49, %s50
    %p59 = scmp.eq.s32.totalorder %s18, 0
    %p60 = por %p58, %p59
    %p61 = scmp.ne.s32.totalorder %s49, %s50
    %p62 = scmp.eq.s32.totalorder %s19, 1
    %p63 = por %p61, %p62
    %p65 = scmp.ne.s32.totalorder %s50, %s64
    %p66 = scmp.eq.s32.totalorder %s19, 0
    %p67 = por %p65, %p66
    %s69 = sadd.s32 %s68, 1
    %p72 = scmp.eq.s32.totalorder %s13, 1
    %p73 = scmp.ne.s32.totalorder %s68, %s70
    %p74 = scmp.eq.s32.totalorder %s13, 0
    %p75 = por %p73, %p74
    %p76 = scmp.ne.s32.totalorder %s68, %s70
    %p77 = scmp.eq.s32.totalorder %s18, 1
    %p78 = por %p76, %p77
    %p79 = scmp.ne.s32.totalorder %s70, %s71
    %p80 = scmp.eq.s32.totalorder %s18, 0
    %p81 = por %p79, %p80
    %p82 = scmp.ne.s32.totalorder %s70, %s71
    %p83 = scmp.eq.s32.totalorder %s19, 1
    %p84 = por %p82, %p83
    %p86 = scmp.ne.s32.totalorder %s71, %s85
    %p87 = scmp.eq.s32.totalorder %s19, 0
    %p88 = por %p86, %p87
    %s90 = sadd.s32 %s89, 1
    %p93 = scmp.eq.s32.totalorder %s13, 1
    %p94 = scmp.ne.s32.totalorder %s89, %s91
    %p95 = scmp.eq.s32.totalorder %s13, 0
    %p96 = por %p94, %p95
    %p97 = scmp.ne.s32.totalorder %s89, %s91
    %p98 = scmp.eq.s32.totalorder %s18, 1
    %p99 = por %p97, %p98
    %p100 = scmp.ne.s32.totalorder %s91, %s92
    %p101 = scmp.eq.s32.totalorder %s18, 0
    %p102 = por %p100, %p101
    %p103 = scmp.ne.s32.totalorder %s91, %s92
    %p104 = scmp.eq.s32.totalorder %s19, 1
    %p105 = por %p103, %p104
    %p107 = scmp.ne.s32.totalorder %s92, %s106
    %p108 = scmp.eq.s32.totalorder %s19, 0
    %p109 = por %p107, %p108
    %s111 = sadd.s32 %s110, 1
    %p114 = scmp.eq.s32.totalorder %s13, 1
    %p115 = scmp.ne.s32.totalorder %s110, %s112
    %p116 = scmp.eq.s32.totalorder %s13, 0
    %p117 = por %p115, %p116
    %p118 = scmp.ne.s32.totalorder %s110, %s112
    %p119 = scmp.eq.s32.totalorder %s18, 1
    %p120 = por %p118, %p119
    %p121 = scmp.ne.s32.totalorder %s112, %s113
    %p122 = scmp.eq.s32.totalorder %s18, 0
    %p123 = por %p121, %p122
    %p124 = scmp.ne.s32.totalorder %s112, %s113
    %p125 = scmp.eq.s32.totalorder %s19, 1
    %p126 = por %p124, %p125
    %p128 = scmp.ne.s32.totalorder %s113, %s127
    %p129 = scmp.eq.s32.totalorder %s19, 0
    %p130 = por %p128, %p129
    %s132 = sadd.s32 %s131, 1
    %p135 = scmp.eq.s32.totalorder %s13, 1
    %p136 = scmp.ne.s32.totalorder %s131, %s133
    %p137 = scmp.eq.s32.totalorder %s13, 0
    %p138 = por %p136, %p137
    %p139 = scmp.ne.s32.totalorder %s131, %s133
    %p140 = scmp.eq.s32.totalorder %s18, 1
    %p141 = por %p139, %p140
    %p142 = scmp.ne.s32.totalorder %s133, %s134
    %p143 = scmp.eq.s32.totalorder %s18, 0
    %p144 = por %p142, %p143
    %p145 = scmp.ne.s32.totalorder %s133, %s134
    %p146 = scmp.eq.s32.totalorder %s19, 1
    %p147 = por %p145, %p146
    %p149 = scmp.ne.s32.totalorder %s134, %s148
    %p150 = scmp.eq.s32.totalorder %s19, 0
    %p151 = por %p149, %p150
    %s153 = sadd.s32 %s152, 1
    %p156 = scmp.eq.s32.totalorder %s13, 1
    %p157 = scmp.ne.s32.totalorder %s152, %s154
    %p158 = scmp.eq.s32.totalorder %s13, 0
    %p159 = por %p157, %p158
    %p160 = scmp.ne.s32.totalorder %s152, %s154
    %p161 = scmp.eq.s32.totalorder %s18, 1
    %p162 = por %p160, %p161
    %p163 = scmp.ne.s32.totalorder %s154, %s155
    %p164 = scmp.eq.s32.totalorder %s18, 0
    %p165 = por %p163, %p164
    %p166 = scmp.ne.s32.totalorder %s154, %s155
    %p167 = scmp.eq.s32.totalorder %s19, 1
    %p168 = por %p166, %p167
    %p170 = scmp.ne.s32.totalorder %s155, %s169
    %p171 = scmp.eq.s32.totalorder %s19, 0
    %p172 = por %p170, %p171
    %s173 = ssub.s32 %s13, %s20
    %p174 = scmp.eq.s32.totalorder %s173, 0
    %s176 = sadd.s32 %s175, 1
    %s177 = scalar_select %p174, %s175, %s176
    %p180 = pneg %p174
    %p181 = scmp.eq.s32.totalorder %s13, 1
    %p182 = por %p180, %p181
    %p183 = scmp.ne.s32.totalorder %s175, %s178
    %p184 = scmp.eq.s32.totalorder %s13, 0
    %p185 = por %p183, %p184
    %p186 = scmp.ne.s32.totalorder %s175, %s178
    %p187 = scmp.eq.s32.totalorder %s18, 1
    %p188 = por %p186, %p187
    %p189 = scmp.ne.s32.totalorder %s178, %s179
    %p190 = scmp.eq.s32.totalorder %s18, 0
    %p191 = por %p189, %p190
    %p192 = scmp.ne.s32.totalorder %s178, %s179
    %p193 = scmp.eq.s32.totalorder %s19, 1
    %p194 = por %p192, %p193
    %p196 = scmp.ne.s32.totalorder %s179, %s195
    %p197 = scmp.eq.s32.totalorder %s19, 0
    %p198 = por %p196, %p197
    %p199 = scmp.le.s32.totalorder 1, %s13
    %p200 = scmp.lt.s32.totalorder %s13, 3
    %p201 = pnand %p199, %p200
    %p202 = pneg %p201
    // Predicated region
    $region9: #{mlp_forward.3} parent=5 // pred_check
      _
    $region10: #{mlp_forward.3} parent=5 // pred_check_branch
      %204 = sbr.rel (%p201) target = $region12
    $region11: #{mlp_forward.3} parent=5 // pred_region
      %s205 = ssub.s32 %s13, 1
      // Predicated region
      $region13: #{mlp_forward.3} parent=11 // pred_check
        %p206 = pneg %p60
      $region14: #{mlp_forward.3} parent=11 // pred_check_branch
        %208 = sbr.rel (%p206) target = $region16
      $region15: #{mlp_forward.3} parent=11 // pred_region
        _
      $region16: #{mlp_forward.3} parent=11 // pred_fallthru
        _
      // Predicated region
      $region17: #{mlp_forward.3} parent=11 // pred_check
        %p209 = pneg %p81
      $region18: #{mlp_forward.3} parent=11 // pred_check_branch
        %211 = sbr.rel (%p209) target = $region20
      $region19: #{mlp_forward.3} parent=11 // pred_region
        _
      $region20: #{mlp_forward.3} parent=11 // pred_fallthru
        _
      // Predicated region
      $region21: #{mlp_forward.3} parent=11 // pred_check
        %p212 = pneg %p102
      $region22: #{mlp_forward.3} parent=11 // pred_check_branch
        %214 = sbr.rel (%p212) target = $region24
      $region23: #{mlp_forward.3} parent=11 // pred_region
        _
      $region24: #{mlp_forward.3} parent=11 // pred_fallthru
        _
      // Predicated region
      $region25: #{mlp_forward.3} parent=11 // pred_check
        %p215 = pneg %p123
      $region26: #{mlp_forward.3} parent=11 // pred_check_branch
        %217 = sbr.rel (%p215) target = $region28
      $region27: #{mlp_forward.3} parent=11 // pred_region
        _
      $region28: #{mlp_forward.3} parent=11 // pred_fallthru
        _
      // Predicated region
      $region29: #{mlp_forward.3} parent=11 // pred_check
        %p218 = pneg %p144
      $region30: #{mlp_forward.3} parent=11 // pred_check_branch
        %220 = sbr.rel (%p218) target = $region32
      $region31: #{mlp_forward.3} parent=11 // pred_region
        _
      $region32: #{mlp_forward.3} parent=11 // pred_fallthru
        _
      // Predicated region
      $region33: #{mlp_forward.3} parent=11 // pred_check
        %p221 = pneg %p165
      $region34: #{mlp_forward.3} parent=11 // pred_check_branch
        %223 = sbr.rel (%p221) target = $region36
      $region35: #{mlp_forward.3} parent=11 // pred_region
        _
      $region36: #{mlp_forward.3} parent=11 // pred_fallthru
        _
    $region12: #{mlp_forward.3} parent=5 // pred_fallthru
      _
    %p224 = scmp.lt.s32.totalorder %s13, 2
    // Predicated region
    $region37: #{mlp_forward.3} parent=5 // pred_check
      %p225 = pneg %p224
    $region38: #{mlp_forward.3} parent=5 // pred_check_branch
      %227 = sbr.rel (%p225) target = $region40
    $region39: #{mlp_forward.3} parent=5 // pred_region
      // Predicated region
      $region41: #{mlp_forward.3} parent=39 // pred_check
        %p228 = pneg %p33
      $region42: #{mlp_forward.3} parent=39 // pred_check_branch
        %230 = sbr.rel (%p228) target = $region44
      $region43: #{mlp_forward.3} parent=39 // pred_region
        %p231 = scmp.lt.s32.totalorder %s13, 1
        %s232 = scalar_select %p231, %s13, 1
        %s233 = smul.addr %s232, 4
        %s234 = scalar_lea.vmem %s0, %s233
      $region44: #{mlp_forward.3} parent=39 // pred_fallthru
        _
    $region40: #{mlp_forward.3} parent=5 // pred_fallthru
      _
    %p235 = scmp.le.s32.totalorder 1, %s13
    %p236 = scmp.lt.s32.totalorder %s13, 3
    %p237 = pnand %p235, %p236
    %p238 = pneg %p237
    // Predicated region
    $region45: #{mlp_forward.3} parent=5 // pred_check
      _
    $region46: #{mlp_forward.3} parent=5 // pred_check_branch
      %240 = sbr.rel (%p237) target = $region48
    $region47: #{mlp_forward.3} parent=5 // pred_region
      %s241 = ssub.s32 %s13, 1
      %p242 = scmp.lt.s32.totalorder %s18, 1
      %s243 = scalar_select %p242, %s18, 1
      %s244 = smul.addr %s243, 4
      %s245 = scalar_lea.vmem %s0, %s244
      %p246 = pneg %p39
      %p247 = pneg %p36
      %p248 = pneg %p60
      %p249 = pneg %p57
      %p250 = pneg %p81
      %p251 = pneg %p78
      %p252 = pneg %p102
      %p253 = pneg %p99
      %p254 = pneg %p123
      %p255 = pneg %p120
      %p256 = pneg %p144
      %p257 = pneg %p141
      %p258 = pneg %p165
      %p259 = pneg %p162
      %p260 = pneg %p191
      %p261 = pneg %p188
      %p262 = scmp.lt.s32.totalorder %s18, 1
      %s263 = scalar_select %p262, %s18, 1
      %s264 = smul.addr %s263, 8
      %s265 = scalar_lea.vmem %s7, %s264
      %p266 = scmp.lt.s32.totalorder %s18, 1
      %s267 = scalar_select %p266, %s18, 1
      %s268 = smul.addr %s267, 4
      %s269 = scalar_lea.vmem %s0, %s268
      %p270 = scmp.lt.s32.totalorder %s18, 1
      %s271 = scalar_select %p270, %s18, 1
      %s272 = smul.addr %s271, 8
      %s273 = scalar_lea.vmem %s7, %s272
      %v275 = vld [vmem:[%s269] sm:$0xf]
      %v276 = vld [vmem:[%s1] sm:$0xf]
      %v277 = vld [vmem:[%s1 + $0x4] sm:$0xf]
      %v278 = vld [vmem:[%s1 + $0x8] sm:$0xf]
      %v279 = vld [vmem:[%s1 + $0xc] sm:$0xf]
      %v280 = vld [vmem:[%s1 + $0x10] sm:$0xf]
      %v281 = vld [vmem:[%s1 + $0x14] sm:$0xf]
      %v282 = vld [vmem:[%s1 + $0x18] sm:$0xf]
      %v283 = vld [vmem:[%s1 + $0x1c] sm:$0xf]
      %v284 = vld [vmem:[%s1 + $0x20] sm:$0xf]
      %v285 = vld [vmem:[%s1 + $0x24] sm:$0xf]
      %v286 = vld [vmem:[%s1 + $0x28] sm:$0xf]
      %v287 = vld [vmem:[%s1 + $0x2c] sm:$0xf]
      %v288 = vld [vmem:[%s1 + $0x30] sm:$0xf]
      %v289 = vld [vmem:[%s1 + $0x34] sm:$0xf]
      %v290 = vld [vmem:[%s1 + $0x38] sm:$0xf]
      %v291 = vld [vmem:[%s1 + $0x3c] sm:$0xf]
      %v292 = vld [vmem:[%s2] sm:$0x1]
      %v294 = vlaneseq
      %v295 = vshrl.u32 %v294, 7
      %v296 = vsub.s32 0, %v295
      %v297 = vrot.slane %v292, %v296
      %v315 = vunpack.c.l.b16 %v276
      %v316 = vunpack.c.l.b16 %v277
      %v317 = vunpack.c.l.b16 %v278
      %v318 = vunpack.c.l.b16 %v279
      %v319 = vunpack.c.l.b16 %v280
      %v320 = vunpack.c.l.b16 %v281
      %v321 = vunpack.c.l.b16 %v282
      %v322 = vunpack.c.l.b16 %v283
      %v323 = vunpack.c.l.b16 %v284
      %v324 = vunpack.c.l.b16 %v285
      %v325 = vunpack.c.l.b16 %v286
      %v326 = vunpack.c.l.b16 %v287
      %v327 = vunpack.c.l.b16 %v288
      %v328 = vunpack.c.l.b16 %v289
      %v329 = vunpack.c.l.b16 %v290
      %v330 = vunpack.c.l.b16 %v291
      %v331 = vpack.c.b16 %v316, %v315
      %v332 = vpack.c.b16 %v318, %v317
      %v333 = vpack.c.b16 %v320, %v319
      %v334 = vpack.c.b16 %v322, %v321
      %v335 = vpack.c.b16 %v324, %v323
      %v336 = vpack.c.b16 %v326, %v325
      %v337 = vpack.c.b16 %v328, %v327
      %v338 = vpack.c.b16 %v330, %v329
      %347 = vmatprep.subr.bf16.mxu0 0
      %348 = vmatpush1.bf16.msra.mxu0 %v331
      %349 = vmatprep.subr.bf16.mxu0 0
      %350 = vmatpush1.bf16.msra.mxu0 %v332
      %351 = vmatprep.subr.bf16.mxu0 0
      %352 = vmatpush1.bf16.msra.mxu0 %v333
      %353 = vmatprep.subr.bf16.mxu0 0
      %354 = vmatpush1.bf16.msra.mxu0 %v334
      %355 = vmatprep.subr.bf16.mxu0 0
      %356 = vmatpush1.bf16.msra.mxu0 %v335
      %357 = vmatprep.subr.bf16.mxu0 0
      %358 = vmatpush1.bf16.msra.mxu0 %v336
      %359 = vmatprep.subr.bf16.mxu0 0
      %360 = vmatpush1.bf16.msra.mxu0 %v337
      %361 = vmatprep.subr.bf16.mxu0 0
      %362 = vmatpush1.bf16.msra.mxu0 %v338
      %363 = vmatprep.subr.bf16.mxu0 0
      %364 = vmatpush1.bf16.msra.mxu0 0
      %365 = vmatprep.subr.bf16.mxu0 0
      %366 = vmatpush1.bf16.msra.mxu0 0
      %367 = vmatprep.subr.bf16.mxu0 0
      %368 = vmatpush1.bf16.msra.mxu0 0
      %369 = vmatprep.subr.bf16.mxu0 0
      %370 = vmatpush1.bf16.msra.mxu0 0
      %371 = vmatprep.subr.bf16.mxu0 0
      %372 = vmatpush1.bf16.msra.mxu0 0
      %373 = vmatprep.subr.bf16.mxu0 0
      %374 = vmatpush1.bf16.msra.mxu0 0
      %375 = vmatprep.subr.bf16.mxu0 0
      %376 = vmatpush1.bf16.msra.mxu0 0
      %377 = vmatprep.subr.bf16.mxu0 0
      %378 = vmatpush1.bf16.msra.mxu0 0
      %379 = vmatprep.mubr.bf16.mxu0 0
      %380 = vmatmul.mubr.bf16.gmra.mrb[0].mxu0 %v275
      %v381 = vpop.f32.mrb[0].mxu0
      %v382 = vadd.f32 %v297, %v381
      %v383 = vpop.f32.mrb[0].mxu0
      %v384 = vpop.f32.mrb[0].mxu0
      %v385 = vpop.f32.mrb[0].mxu0
      %386 = vdwg.mxu0
      %vm387 = vcmp.gt.f32.partialorder %v382, 0.0
      %v388 = vmul.f32 %v382, 1.442695
      %v389 = vpow.pop %v388
      %v390 = vsub.f32 %v389, 1.0
      %v391 = vsel %vm387, %v382, %v390
      %v392 = vpack.c.bf16 %v391, %v391
      %v393 = vld [vmem:[%s3] sm:$0xf]
      %v394 = vld [vmem:[%s3 + $0x4] sm:$0xf]
      %v395 = vld [vmem:[%s3 + $0x8] sm:$0xf]
      %v396 = vld [vmem:[%s3 + $0xc] sm:$0xf]
      %v397 = vld [vmem:[%s3 + $0x10] sm:$0xf]
      %v398 = vld [vmem:[%s3 + $0x14] sm:$0xf]
      %v399 = vld [vmem:[%s3 + $0x18] sm:$0xf]
      %v400 = vld [vmem:[%s3 + $0x1c] sm:$0xf]
      %v401 = vld [vmem:[%s3 + $0x20] sm:$0xf]
      %v402 = vld [vmem:[%s3 + $0x24] sm:$0xf]
      %v403 = vld [vmem:[%s3 + $0x28] sm:$0xf]
      %v404 = vld [vmem:[%s3 + $0x2c] sm:$0xf]
      %v405 = vld [vmem:[%s3 + $0x30] sm:$0xf]
      %v406 = vld [vmem:[%s3 + $0x34] sm:$0xf]
      %v407 = vld [vmem:[%s3 + $0x38] sm:$0xf]
      %v408 = vld [vmem:[%s3 + $0x3c] sm:$0xf]
      %v409 = vld [vmem:[%s4] sm:$0x1]
      %v411 = vlaneseq
      %v412 = vshrl.u32 %v411, 7
      %v413 = vsub.s32 0, %v412
      %v414 = vrot.slane %v409, %v413
      %v432 = vunpack.c.l.b16 %v393
      %v433 = vunpack.c.l.b16 %v394
      %v434 = vunpack.c.l.b16 %v395
      %v435 = vunpack.c.l.b16 %v396
      %v436 = vunpack.c.l.b16 %v397
      %v437 = vunpack.c.l.b16 %v398
      %v438 = vunpack.c.l.b16 %v399
      %v439 = vunpack.c.l.b16 %v400
      %v440 = vunpack.c.l.b16 %v401
      %v441 = vunpack.c.l.b16 %v402
      %v442 = vunpack.c.l.b16 %v403
      %v443 = vunpack.c.l.b16 %v404
      %v444 = vunpack.c.l.b16 %v405
      %v445 = vunpack.c.l.b16 %v406
      %v446 = vunpack.c.l.b16 %v407
      %v447 = vunpack.c.l.b16 %v408
      %v448 = vpack.c.b16 %v433, %v432
      %v449 = vpack.c.b16 %v435, %v434
      %v450 = vpack.c.b16 %v437, %v436
      %v451 = vpack.c.b16 %v439, %v438
      %v452 = vpack.c.b16 %v441, %v440
      %v453 = vpack.c.b16 %v443, %v442
      %v454 = vpack.c.b16 %v445, %v444
      %v455 = vpack.c.b16 %v447, %v446
      %464 = vmatprep.subr.bf16.mxu0 0
      %465 = vmatpush1.bf16.msra.mxu0 %v448
      %466 = vmatprep.subr.bf16.mxu0 0
      %467 = vmatpush1.bf16.msra.mxu0 %v449
      %468 = vmatprep.subr.bf16.mxu0 0
      %469 = vmatpush1.bf16.msra.mxu0 %v450
      %470 = vmatprep.subr.bf16.mxu0 0
      %471 = vmatpush1.bf16.msra.mxu0 %v451
      %472 = vmatprep.subr.bf16.mxu0 0
      %473 = vmatpush1.bf16.msra.mxu0 %v452
      %474 = vmatprep.subr.bf16.mxu0 0
      %475 = vmatpush1.bf16.msra.mxu0 %v453
      %476 = vmatprep.subr.bf16.mxu0 0
      %477 = vmatpush1.bf16.msra.mxu0 %v454
      %478 = vmatprep.subr.bf16.mxu0 0
      %479 = vmatpush1.bf16.msra.mxu0 %v455
      %480 = vmatprep.subr.bf16.mxu0 0
      %481 = vmatpush1.bf16.msra.mxu0 0
      %482 = vmatprep.subr.bf16.mxu0 0
      %483 = vmatpush1.bf16.msra.mxu0 0
      %484 = vmatprep.subr.bf16.mxu0 0
      %485 = vmatpush1.bf16.msra.mxu0 0
      %486 = vmatprep.subr.bf16.mxu0 0
      %487 = vmatpush1.bf16.msra.mxu0 0
      %488 = vmatprep.subr.bf16.mxu0 0
      %489 = vmatpush1.bf16.msra.mxu0 0
      %490 = vmatprep.subr.bf16.mxu0 0
      %491 = vmatpush1.bf16.msra.mxu0 0
      %492 = vmatprep.subr.bf16.mxu0 0
      %493 = vmatpush1.bf16.msra.mxu0 0
      %494 = vmatprep.subr.bf16.mxu0 0
      %495 = vmatpush1.bf16.msra.mxu0 0
      %496 = vmatprep.mubr.bf16.mxu0 0
      %497 = vmatmul.mubr.bf16.gmra.mrb[0].mxu0 %v392
      %v498 = vpop.f32.mrb[0].mxu0
      %v499 = vadd.f32 %v414, %v498
      %v500 = vpop.f32.mrb[0].mxu0
      %v501 = vpop.f32.mrb[0].mxu0
      %v502 = vpop.f32.mrb[0].mxu0
      %503 = vdwg.mxu0
      %vm504 = vcmp.gt.f32.partialorder %v499, 0.0
      %v505 = vmul.f32 %v499, 1.442695
      %v506 = vpow.pop %v505
      %v507 = vsub.f32 %v506, 1.0
      %v508 = vsel %vm504, %v499, %v507
      %v509 = vld [vmem:[%s5] sm:$0x1]
      %v511 = vlaneseq
      %v512 = vshrl.u32 %v511, 7
      %v513 = vsub.s32 0, %v512
      %v514 = vrot.slane %v509, %v513
      %v516 = vmul.f32 %v508, %v514
      %v517 = vld [vmem:[%s6] sm:$0x1]
      %v519 = vlaneseq
      %v520 = vshrl.u32 %v519, 7
      %v521 = vsub.s32 0, %v520
      %v522 = vrot.slane %v517, %v521
      %v524 = vadd.f32 %v516, %v522
      %525 = vst [vmem:[%s273] sm:$0xff] %v524
      %p526 = scmp.lt.s32.totalorder %s18, 1
      %s527 = scalar_select %p526, %s18, 1
      %s528 = smul.addr %s527, 8
      %s529 = scalar_lea.vmem %s7, %s528
      // Predicated region
      $region49: #{mlp_forward.3} parent=47 // pred_check
        %p530 = pneg %p188
      $region50: #{mlp_forward.3} parent=47 // pred_check_branch
        %532 = sbr.rel (%p530) target = $region52
      $region51: #{mlp_forward.3} parent=47 // pred_region
        _
      $region52: #{mlp_forward.3} parent=47 // pred_fallthru
        _
    $region48: #{mlp_forward.3} parent=5 // pred_fallthru
      _
    %p533 = scmp.le.s32.totalorder 2, %s13
    // Predicated region
    $region53: #{mlp_forward.3} parent=5 // pred_check
      %p534 = pneg %p533
    $region54: #{mlp_forward.3} parent=5 // pred_check_branch
      %536 = sbr.rel (%p534) target = $region56
    $region55: #{mlp_forward.3} parent=5 // pred_region
      %s537 = ssub.s32 %s13, 2
      // Predicated region
      $region57: #{mlp_forward.3} parent=55 // pred_check
        %p538 = pneg %p194
      $region58: #{mlp_forward.3} parent=55 // pred_check_branch
        %540 = sbr.rel (%p538) target = $region60
      $region59: #{mlp_forward.3} parent=55 // pred_region
        %p541 = scmp.lt.s32.totalorder %s19, 1
        %s542 = scalar_select %p541, %s19, 1
        %s543 = smul.addr %s542, 8
        %s544 = scalar_lea.vmem %s7, %s543
      $region60: #{mlp_forward.3} parent=55 // pred_fallthru
        _
    $region56: #{mlp_forward.3} parent=5 // pred_fallthru
      _
  $region6: #{mlp_forward.3} parent=0 // loop_footer
    %s17 = sadd.s32 1, %s13
  $region7: #{mlp_forward.3} parent=0 // loop_footer_branch
    %12 = sbr.rel target = $region3
  $region8: #{mlp_forward.3} parent=0 // loop_exit
    _

// kernel: mlp_forward.2
$region0: #{mlp_forward.2}
  #allocation0 [shape = 'u32[]', space=smem, size = 0x4, offset = 0x4, fixed_abs, tag = 'smem constant byte address 0x4 - core index']
  #allocation1 [shape = 'u32[144,128]{1,0:T(1,128)}', space=vmem, size = 0x12000, scoped, tag = 'internal scratch']
  %s0 = inlined_call_operand.vmem [shape: bf16[16,128], index: 0, kind: input, shape index: {}]
  %s1 = inlined_call_operand.vmem [shape: bf16[128,128], index: 1, kind: input, shape index: {}]
  %s2 = inlined_call_operand.vmem [shape: f32[1,128], index: 2, kind: input, shape index: {}]
  %s3 = inlined_call_operand.vmem [shape: bf16[128,128], index: 3, kind: input, shape index: {}]
  %s4 = inlined_call_operand.vmem [shape: f32[1,128], index: 4, kind: input, shape index: {}]
  %s5 = inlined_call_operand.vmem [shape: f32[2,2,128], index: 5, kind: output, shape index: {}]
  %s6 = sld [smem:[#allocation0]]
  $region53: #{mlp_forward.2} parent=0
    _
  %s8 = ssub.s32 1, %s6
  %s9 = scalar_select 0, %s8, %s6
  loop: start=0, step=1, limit=4
  $region2: #{mlp_forward.2} parent=0 // loop_pre_header
    _
  $region3: #{mlp_forward.2} parent=0 // loop_header
    %s11 = sphi 0, %s15
    %p12 = scmp.ge.s32.totalorder %s11, 4
    %s21 = sphi 0, %s23
    %s24 = sphi 0, %s21
    %s25 = sphi 0, %s24
    %s41 = sphi 0, %s25
    %s45 = sphi 0, %s45
    %s47 = sphi 0, %s45
    %s48 = sphi 0, %s47
    %s62 = sphi 0, %s48
    %s66 = sphi 0, %s66
    %s68 = sphi 0, %s66
    %s69 = sphi 0, %s68
    %s83 = sphi 0, %s69
    %s87 = sphi 0, %s87
    %s89 = sphi 0, %s87
    %s90 = sphi 0, %s89
    %s104 = sphi 0, %s90
    %s108 = sphi 0, %s108
    %s110 = sphi 0, %s108
    %s111 = sphi 0, %s110
    %s125 = sphi 0, %s111
    %s131 = sphi 0, %s133
    %s134 = sphi 0, %s131
    %s135 = sphi 0, %s134
    %s151 = sphi 0, %s135
  $region4: #{mlp_forward.2} parent=0 // loop_header_branch
    %14 = sbr.rel (%p12) target = $region8
  $region5: #{mlp_forward.2} parent=0 // loop_body
    %s16 = ssub.s32 %s11, 1
    %s17 = ssub.s32 %s11, 2
    %s18 = sadd.s32 %s11, 1
    %s19 = ssub.s32 %s11, %s18
    %p20 = scmp.eq.s32.totalorder %s19, 0
    %s22 = sadd.s32 %s21, 1
    %s23 = scalar_select %p20, %s21, %s22
    %p26 = pneg %p20
    %p27 = scmp.eq.s32.totalorder %s11, 1
    %p28 = por %p26, %p27
    %p29 = scmp.ne.s32.totalorder %s21, %s24
    %p30 = scmp.eq.s32.totalorder %s11, 0
    %p31 = por %p29, %p30
    %p32 = scmp.ne.s32.totalorder %s21, %s24
    %p33 = scmp.eq.s32.totalorder %s16, 1
    %p34 = por %p32, %p33
    %p35 = scmp.ne.s32.totalorder %s24, %s25
    %p36 = scmp.eq.s32.totalorder %s16, 0
    %p37 = por %p35, %p36
    %p38 = scmp.ne.s32.totalorder %s24, %s25
    %p39 = scmp.eq.s32.totalorder %s17, 1
    %p40 = por %p38, %p39
    %p42 = scmp.ne.s32.totalorder %s25, %s41
    %p43 = scmp.eq.s32.totalorder %s17, 0
    %p44 = por %p42, %p43
    %s46 = sadd.s32 %s45, 1
    %p49 = scmp.eq.s32.totalorder %s11, 1
    %p50 = scmp.ne.s32.totalorder %s45, %s47
    %p51 = scmp.eq.s32.totalorder %s11, 0
    %p52 = por %p50, %p51
    %p53 = scmp.ne.s32.totalorder %s45, %s47
    %p54 = scmp.eq.s32.totalorder %s16, 1
    %p55 = por %p53, %p54
    %p56 = scmp.ne.s32.totalorder %s47, %s48
    %p57 = scmp.eq.s32.totalorder %s16, 0
    %p58 = por %p56, %p57
    %p59 = scmp.ne.s32.totalorder %s47, %s48
    %p60 = scmp.eq.s32.totalorder %s17, 1
    %p61 = por %p59, %p60
    %p63 = scmp.ne.s32.totalorder %s48, %s62
    %p64 = scmp.eq.s32.totalorder %s17, 0
    %p65 = por %p63, %p64
    %s67 = sadd.s32 %s66, 1
    %p70 = scmp.eq.s32.totalorder %s11, 1
    %p71 = scmp.ne.s32.totalorder %s66, %s68
    %p72 = scmp.eq.s32.totalorder %s11, 0
    %p73 = por %p71, %p72
    %p74 = scmp.ne.s32.totalorder %s66, %s68
    %p75 = scmp.eq.s32.totalorder %s16, 1
    %p76 = por %p74, %p75
    %p77 = scmp.ne.s32.totalorder %s68, %s69
    %p78 = scmp.eq.s32.totalorder %s16, 0
    %p79 = por %p77, %p78
    %p80 = scmp.ne.s32.totalorder %s68, %s69
    %p81 = scmp.eq.s32.totalorder %s17, 1
    %p82 = por %p80, %p81
    %p84 = scmp.ne.s32.totalorder %s69, %s83
    %p85 = scmp.eq.s32.totalorder %s17, 0
    %p86 = por %p84, %p85
    %s88 = sadd.s32 %s87, 1
    %p91 = scmp.eq.s32.totalorder %s11, 1
    %p92 = scmp.ne.s32.totalorder %s87, %s89
    %p93 = scmp.eq.s32.totalorder %s11, 0
    %p94 = por %p92, %p93
    %p95 = scmp.ne.s32.totalorder %s87, %s89
    %p96 = scmp.eq.s32.totalorder %s16, 1
    %p97 = por %p95, %p96
    %p98 = scmp.ne.s32.totalorder %s89, %s90
    %p99 = scmp.eq.s32.totalorder %s16, 0
    %p100 = por %p98, %p99
    %p101 = scmp.ne.s32.totalorder %s89, %s90
    %p102 = scmp.eq.s32.totalorder %s17, 1
    %p103 = por %p101, %p102
    %p105 = scmp.ne.s32.totalorder %s90, %s104
    %p106 = scmp.eq.s32.totalorder %s17, 0
    %p107 = por %p105, %p106
    %s109 = sadd.s32 %s108, 1
    %p112 = scmp.eq.s32.totalorder %s11, 1
    %p113 = scmp.ne.s32.totalorder %s108, %s110
    %p114 = scmp.eq.s32.totalorder %s11, 0
    %p115 = por %p113, %p114
    %p116 = scmp.ne.s32.totalorder %s108, %s110
    %p117 = scmp.eq.s32.totalorder %s16, 1
    %p118 = por %p116, %p117
    %p119 = scmp.ne.s32.totalorder %s110, %s111
    %p120 = scmp.eq.s32.totalorder %s16, 0
    %p121 = por %p119, %p120
    %p122 = scmp.ne.s32.totalorder %s110, %s111
    %p123 = scmp.eq.s32.totalorder %s17, 1
    %p124 = por %p122, %p123
    %p126 = scmp.ne.s32.totalorder %s111, %s125
    %p127 = scmp.eq.s32.totalorder %s17, 0
    %p128 = por %p126, %p127
    %s129 = ssub.s32 %s11, %s18
    %p130 = scmp.eq.s32.totalorder %s129, 0
    %s132 = sadd.s32 %s131, 1
    %s133 = scalar_select %p130, %s131, %s132
    %p136 = pneg %p130
    %p137 = scmp.eq.s32.totalorder %s11, 1
    %p138 = por %p136, %p137
    %p139 = scmp.ne.s32.totalorder %s131, %s134
    %p140 = scmp.eq.s32.totalorder %s11, 0
    %p141 = por %p139, %p140
    %p142 = scmp.ne.s32.totalorder %s131, %s134
    %p143 = scmp.eq.s32.totalorder %s16, 1
    %p144 = por %p142, %p143
    %p145 = scmp.ne.s32.totalorder %s134, %s135
    %p146 = scmp.eq.s32.totalorder %s16, 0
    %p147 = por %p145, %p146
    %p148 = scmp.ne.s32.totalorder %s134, %s135
    %p149 = scmp.eq.s32.totalorder %s17, 1
    %p150 = por %p148, %p149
    %p152 = scmp.ne.s32.totalorder %s135, %s151
    %p153 = scmp.eq.s32.totalorder %s17, 0
    %p154 = por %p152, %p153
    %p155 = scmp.le.s32.totalorder 1, %s11
    %p156 = scmp.lt.s32.totalorder %s11, 3
    %p157 = pnand %p155, %p156
    %p158 = pneg %p157
    // Predicated region
    $region9: #{mlp_forward.2} parent=5 // pred_check
      _
    $region10: #{mlp_forward.2} parent=5 // pred_check_branch
      %160 = sbr.rel (%p157) target = $region12
    $region11: #{mlp_forward.2} parent=5 // pred_region
      %s161 = ssub.s32 %s11, 1
      // Predicated region
      $region13: #{mlp_forward.2} parent=11 // pred_check
        %p162 = pneg %p58
      $region14: #{mlp_forward.2} parent=11 // pred_check_branch
        %164 = sbr.rel (%p162) target = $region16
      $region15: #{mlp_forward.2} parent=11 // pred_region
        _
      $region16: #{mlp_forward.2} parent=11 // pred_fallthru
        _
      // Predicated region
      $region17: #{mlp_forward.2} parent=11 // pred_check
        %p165 = pneg %p79
      $region18: #{mlp_forward.2} parent=11 // pred_check_branch
        %167 = sbr.rel (%p165) target = $region20
      $region19: #{mlp_forward.2} parent=11 // pred_region
        _
      $region20: #{mlp_forward.2} parent=11 // pred_fallthru
        _
      // Predicated region
      $region21: #{mlp_forward.2} parent=11 // pred_check
        %p168 = pneg %p100
      $region22: #{mlp_forward.2} parent=11 // pred_check_branch
        %170 = sbr.rel (%p168) target = $region24
      $region23: #{mlp_forward.2} parent=11 // pred_region
        _
      $region24: #{mlp_forward.2} parent=11 // pred_fallthru
        _
      // Predicated region
      $region25: #{mlp_forward.2} parent=11 // pred_check
        %p171 = pneg %p121
      $region26: #{mlp_forward.2} parent=11 // pred_check_branch
        %173 = sbr.rel (%p171) target = $region28
      $region27: #{mlp_forward.2} parent=11 // pred_region
        _
      $region28: #{mlp_forward.2} parent=11 // pred_fallthru
        _
    $region12: #{mlp_forward.2} parent=5 // pred_fallthru
      _
    %p174 = scmp.lt.s32.totalorder %s11, 2
    // Predicated region
    $region29: #{mlp_forward.2} parent=5 // pred_check
      %p175 = pneg %p174
    $region30: #{mlp_forward.2} parent=5 // pred_check_branch
      %177 = sbr.rel (%p175) target = $region32
    $region31: #{mlp_forward.2} parent=5 // pred_region
      // Predicated region
      $region33: #{mlp_forward.2} parent=31 // pred_check
        %p178 = pneg %p31
      $region34: #{mlp_forward.2} parent=31 // pred_check_branch
        %180 = sbr.rel (%p178) target = $region36
      $region35: #{mlp_forward.2} parent=31 // pred_region
        %p181 = scmp.lt.s32.totalorder %s11, 1
        %s182 = scalar_select %p181, %s11, 1
        %s183 = smul.addr %s182, 4
        %s184 = scalar_lea.vmem %s0, %s183
      $region36: #{mlp_forward.2} parent=31 // pred_fallthru
        _
    $region32: #{mlp_forward.2} parent=5 // pred_fallthru
      _
    %p185 = scmp.le.s32.totalorder 1, %s11
    %p186 = scmp.lt.s32.totalorder %s11, 3
    %p187 = pnand %p185, %p186
    %p188 = pneg %p187
    // Predicated region
    $region37: #{mlp_forward.2} parent=5 // pred_check
      _
    $region38: #{mlp_forward.2} parent=5 // pred_check_branch
      %190 = sbr.rel (%p187) target = $region40
    $region39: #{mlp_forward.2} parent=5 // pred_region
      %s191 = ssub.s32 %s11, 1
      %p192 = scmp.lt.s32.totalorder %s16, 1
      %s193 = scalar_select %p192, %s16, 1
      %s194 = smul.addr %s193, 4
      %s195 = scalar_lea.vmem %s0, %s194
      %p196 = pneg %p37
      %p197 = pneg %p34
      %p198 = pneg %p58
      %p199 = pneg %p55
      %p200 = pneg %p79
      %p201 = pneg %p76
      %p202 = pneg %p100
      %p203 = pneg %p97
      %p204 = pneg %p121
      %p205 = pneg %p118
      %p206 = pneg %p147
      %p207 = pneg %p144
      %p208 = scmp.lt.s32.totalorder %s16, 1
      %s209 = scalar_select %p208, %s16, 1
      %s210 = smul.addr %s209, 2
      %s211 = scalar_lea.vmem %s5, %s210
      %p212 = scmp.lt.s32.totalorder %s16, 1
      %s213 = scalar_select %p212, %s16, 1
      %s214 = smul.addr %s213, 4
      %s215 = scalar_lea.vmem %s0, %s214
      %p216 = scmp.lt.s32.totalorder %s16, 1
      %s217 = scalar_select %p216, %s16, 1
      %s218 = smul.addr %s217, 2
      %s219 = scalar_lea.vmem %s5, %s218
      %v221 = vld [vmem:[%s215] sm:$0xf]
      %v222 = vld [vmem:[%s1] sm:$0xf]
      %v223 = vld [vmem:[%s1 + $0x4] sm:$0xf]
      %v224 = vld [vmem:[%s1 + $0x8] sm:$0xf]
      %v225 = vld [vmem:[%s1 + $0xc] sm:$0xf]
      %v226 = vld [vmem:[%s1 + $0x10] sm:$0xf]
      %v227 = vld [vmem:[%s1 + $0x14] sm:$0xf]
      %v228 = vld [vmem:[%s1 + $0x18] sm:$0xf]
      %v229 = vld [vmem:[%s1 + $0x1c] sm:$0xf]
      %v230 = vld [vmem:[%s1 + $0x20] sm:$0xf]
      %v231 = vld [vmem:[%s1 + $0x24] sm:$0xf]
      %v232 = vld [vmem:[%s1 + $0x28] sm:$0xf]
      %v233 = vld [vmem:[%s1 + $0x2c] sm:$0xf]
      %v234 = vld [vmem:[%s1 + $0x30] sm:$0xf]
      %v235 = vld [vmem:[%s1 + $0x34] sm:$0xf]
      %v236 = vld [vmem:[%s1 + $0x38] sm:$0xf]
      %v237 = vld [vmem:[%s1 + $0x3c] sm:$0xf]
      %v238 = vld [vmem:[%s2] sm:$0x1]
      %v240 = vlaneseq
      %v241 = vshrl.u32 %v240, 7
      %v242 = vsub.s32 0, %v241
      %v243 = vrot.slane %v238, %v242
      %v261 = vunpack.c.l.b16 %v222
      %v262 = vunpack.c.l.b16 %v223
      %v263 = vunpack.c.l.b16 %v224
      %v264 = vunpack.c.l.b16 %v225
      %v265 = vunpack.c.l.b16 %v226
      %v266 = vunpack.c.l.b16 %v227
      %v267 = vunpack.c.l.b16 %v228
      %v268 = vunpack.c.l.b16 %v229
      %v269 = vunpack.c.l.b16 %v230
      %v270 = vunpack.c.l.b16 %v231
      %v271 = vunpack.c.l.b16 %v232
      %v272 = vunpack.c.l.b16 %v233
      %v273 = vunpack.c.l.b16 %v234
      %v274 = vunpack.c.l.b16 %v235
      %v275 = vunpack.c.l.b16 %v236
      %v276 = vunpack.c.l.b16 %v237
      %v277 = vpack.c.b16 %v262, %v261
      %v278 = vpack.c.b16 %v264, %v263
      %v279 = vpack.c.b16 %v266, %v265
      %v280 = vpack.c.b16 %v268, %v267
      %v281 = vpack.c.b16 %v270, %v269
      %v282 = vpack.c.b16 %v272, %v271
      %v283 = vpack.c.b16 %v274, %v273
      %v284 = vpack.c.b16 %v276, %v275
      %293 = vmatprep.subr.bf16.mxu0 0
      %294 = vmatpush1.bf16.msra.mxu0 %v277
      %295 = vmatprep.subr.bf16.mxu0 0
      %296 = vmatpush1.bf16.msra.mxu0 %v278
      %297 = vmatprep.subr.bf16.mxu0 0
      %298 = vmatpush1.bf16.msra.mxu0 %v279
      %299 = vmatprep.subr.bf16.mxu0 0
      %300 = vmatpush1.bf16.msra.mxu0 %v280
      %301 = vmatprep.subr.bf16.mxu0 0
      %302 = vmatpush1.bf16.msra.mxu0 %v281
      %303 = vmatprep.subr.bf16.mxu0 0
      %304 = vmatpush1.bf16.msra.mxu0 %v282
      %305 = vmatprep.subr.bf16.mxu0 0
      %306 = vmatpush1.bf16.msra.mxu0 %v283
      %307 = vmatprep.subr.bf16.mxu0 0
      %308 = vmatpush1.bf16.msra.mxu0 %v284
      %309 = vmatprep.subr.bf16.mxu0 0
      %310 = vmatpush1.bf16.msra.mxu0 0
      %311 = vmatprep.subr.bf16.mxu0 0
      %312 = vmatpush1.bf16.msra.mxu0 0
      %313 = vmatprep.subr.bf16.mxu0 0
      %314 = vmatpush1.bf16.msra.mxu0 0
      %315 = vmatprep.subr.bf16.mxu0 0
      %316 = vmatpush1.bf16.msra.mxu0 0
      %317 = vmatprep.subr.bf16.mxu0 0
      %318 = vmatpush1.bf16.msra.mxu0 0
      %319 = vmatprep.subr.bf16.mxu0 0
      %320 = vmatpush1.bf16.msra.mxu0 0
      %321 = vmatprep.subr.bf16.mxu0 0
      %322 = vmatpush1.bf16.msra.mxu0 0
      %323 = vmatprep.subr.bf16.mxu0 0
      %324 = vmatpush1.bf16.msra.mxu0 0
      %325 = vmatprep.mubr.bf16.mxu0 0
      %326 = vmatmul.mubr.bf16.gmra.mrb[0].mxu0 %v221
      %v327 = vpop.f32.mrb[0].mxu0
      %v328 = vadd.f32 %v243, %v327
      %v329 = vpop.f32.mrb[0].mxu0
      %v330 = vpop.f32.mrb[0].mxu0
      %v331 = vpop.f32.mrb[0].mxu0
      %332 = vdwg.mxu0
      %vm333 = vcmp.gt.f32.partialorder %v328, 0.0
      %v334 = vmul.f32 %v328, 1.442695
      %v335 = vpow.pop %v334
      %v336 = vsub.f32 %v335, 1.0
      %v337 = vsel %vm333, %v328, %v336
      %v338 = vpack.c.bf16 %v337, %v337
      %v339 = vld [vmem:[%s3] sm:$0xf]
      %v340 = vld [vmem:[%s3 + $0x4] sm:$0xf]
      %v341 = vld [vmem:[%s3 + $0x8] sm:$0xf]
      %v342 = vld [vmem:[%s3 + $0xc] sm:$0xf]
      %v343 = vld [vmem:[%s3 + $0x10] sm:$0xf]
      %v344 = vld [vmem:[%s3 + $0x14] sm:$0xf]
      %v345 = vld [vmem:[%s3 + $0x18] sm:$0xf]
      %v346 = vld [vmem:[%s3 + $0x1c] sm:$0xf]
      %v347 = vld [vmem:[%s3 + $0x20] sm:$0xf]
      %v348 = vld [vmem:[%s3 + $0x24] sm:$0xf]
      %v349 = vld [vmem:[%s3 + $0x28] sm:$0xf]
      %v350 = vld [vmem:[%s3 + $0x2c] sm:$0xf]
      %v351 = vld [vmem:[%s3 + $0x30] sm:$0xf]
      %v352 = vld [vmem:[%s3 + $0x34] sm:$0xf]
      %v353 = vld [vmem:[%s3 + $0x38] sm:$0xf]
      %v354 = vld [vmem:[%s3 + $0x3c] sm:$0xf]
      %v355 = vld [vmem:[%s4] sm:$0x1]
      %v357 = vlaneseq
      %v358 = vshrl.u32 %v357, 7
      %v359 = vsub.s32 0, %v358
      %v360 = vrot.slane %v355, %v359
      %v378 = vunpack.c.l.b16 %v339
      %v379 = vunpack.c.l.b16 %v340
      %v380 = vunpack.c.l.b16 %v341
      %v381 = vunpack.c.l.b16 %v342
      %v382 = vunpack.c.l.b16 %v343
      %v383 = vunpack.c.l.b16 %v344
      %v384 = vunpack.c.l.b16 %v345
      %v385 = vunpack.c.l.b16 %v346
      %v386 = vunpack.c.l.b16 %v347
      %v387 = vunpack.c.l.b16 %v348
      %v388 = vunpack.c.l.b16 %v349
      %v389 = vunpack.c.l.b16 %v350
      %v390 = vunpack.c.l.b16 %v351
      %v391 = vunpack.c.l.b16 %v352
      %v392 = vunpack.c.l.b16 %v353
      %v393 = vunpack.c.l.b16 %v354
      %v394 = vpack.c.b16 %v379, %v378
      %v395 = vpack.c.b16 %v381, %v380
      %v396 = vpack.c.b16 %v383, %v382
      %v397 = vpack.c.b16 %v385, %v384
      %v398 = vpack.c.b16 %v387, %v386
      %v399 = vpack.c.b16 %v389, %v388
      %v400 = vpack.c.b16 %v391, %v390
      %v401 = vpack.c.b16 %v393, %v392
      %410 = vmatprep.subr.bf16.mxu0 0
      %411 = vmatpush1.bf16.msra.mxu0 %v394
      %412 = vmatprep.subr.bf16.mxu0 0
      %413 = vmatpush1.bf16.msra.mxu0 %v395
      %414 = vmatprep.subr.bf16.mxu0 0
      %415 = vmatpush1.bf16.msra.mxu0 %v396
      %416 = vmatprep.subr.bf16.mxu0 0
      %417 = vmatpush1.bf16.msra.mxu0 %v397
      %418 = vmatprep.subr.bf16.mxu0 0
      %419 = vmatpush1.bf16.msra.mxu0 %v398
      %420 = vmatprep.subr.bf16.mxu0 0
      %421 = vmatpush1.bf16.msra.mxu0 %v399
      %422 = vmatprep.subr.bf16.mxu0 0
      %423 = vmatpush1.bf16.msra.mxu0 %v400
      %424 = vmatprep.subr.bf16.mxu0 0
      %425 = vmatpush1.bf16.msra.mxu0 %v401
      %426 = vmatprep.subr.bf16.mxu0 0
      %427 = vmatpush1.bf16.msra.mxu0 0
      %428 = vmatprep.subr.bf16.mxu0 0
      %429 = vmatpush1.bf16.msra.mxu0 0
      %430 = vmatprep.subr.bf16.mxu0 0
      %431 = vmatpush1.bf16.msra.mxu0 0
      %432 = vmatprep.subr.bf16.mxu0 0
      %433 = vmatpush1.bf16.msra.mxu0 0
      %434 = vmatprep.subr.bf16.mxu0 0
      %435 = vmatpush1.bf16.msra.mxu0 0
      %436 = vmatprep.subr.bf16.mxu0 0
      %437 = vmatpush1.bf16.msra.mxu0 0
      %438 = vmatprep.subr.bf16.mxu0 0
      %439 = vmatpush1.bf16.msra.mxu0 0
      %440 = vmatprep.subr.bf16.mxu0 0
      %441 = vmatpush1.bf16.msra.mxu0 0
      %442 = vmatprep.mubr.bf16.mxu0 0
      %443 = vmatmul.mubr.bf16.gmra.mrb[0].mxu0 %v338
      %v444 = vpop.f32.mrb[0].mxu0
      %v445 = vadd.f32 %v360, %v444
      %v446 = vpop.f32.mrb[0].mxu0
      %v447 = vpop.f32.mrb[0].mxu0
      %v448 = vpop.f32.mrb[0].mxu0
      %449 = vdwg.mxu0
      %vm450 = vcmp.gt.f32.partialorder %v445, 0.0
      %v451 = vmul.f32 %v445, 1.442695
      %v452 = vpow.pop %v451
      %v453 = vsub.f32 %v452, 1.0
      %v454 = vsel %vm450, %v445, %v453
      %v455 = vrot.slane %v454, 4
      %v456 = vadd.f32 %v454, %v455
      %v457 = vrot.slane %v456, 2
      %v458 = vadd.f32 %v456, %v457
      %v459 = vrot.slane %v458, 1
      %v460 = vadd.f32 %v458, %v459
      %461 = vst [vmem:[%s219] sm:$0x1] %v460
      %v462 = vmul.f32 %v454, %v454
      %v463 = vrot.slane %v462, 4
      %v464 = vadd.f32 %v462, %v463
      %v465 = vrot.slane %v464, 2
      %v466 = vadd.f32 %v464, %v465
      %v467 = vrot.slane %v466, 1
      %v468 = vadd.f32 %v466, %v467
      %469 = vst [vmem:[%s219 + $0x1] sm:$0x1] %v468
      %p470 = scmp.lt.s32.totalorder %s16, 1
      %s471 = scalar_select %p470, %s16, 1
      %s472 = smul.addr %s471, 2
      %s473 = scalar_lea.vmem %s5, %s472
      // Predicated region
      $region41: #{mlp_forward.2} parent=39 // pred_check
        %p474 = pneg %p144
      $region42: #{mlp_forward.2} parent=39 // pred_check_branch
        %476 = sbr.rel (%p474) target = $region44
      $region43: #{mlp_forward.2} parent=39 // pred_region
        _
      $region44: #{mlp_forward.2} parent=39 // pred_fallthru
        _
    $region40: #{mlp_forward.2} parent=5 // pred_fallthru
      _
    %p477 = scmp.le.s32.totalorder 2, %s11
    // Predicated region
    $region45: #{mlp_forward.2} parent=5 // pred_check
      %p478 = pneg %p477
    $region46: #{mlp_forward.2} parent=5 // pred_check_branch
      %480 = sbr.rel (%p478) target = $region48
    $region47: #{mlp_forward.2} parent=5 // pred_region
      %s481 = ssub.s32 %s11, 2
      // Predicated region
      $region49: #{mlp_forward.2} parent=47 // pred_check
        %p482 = pneg %p150
      $region50: #{mlp_forward.2} parent=47 // pred_check_branch
        %484 = sbr.rel (%p482) target = $region52
      $region51: #{mlp_forward.2} parent=47 // pred_region
        %p485 = scmp.lt.s32.totalorder %s17, 1
        %s486 = scalar_select %p485, %s17, 1
        %s487 = smul.addr %s486, 2
        %s488 = scalar_lea.vmem %s5, %s487
      $region52: #{mlp_forward.2} parent=47 // pred_fallthru
        _
    $region48: #{mlp_forward.2} parent=5 // pred_fallthru
      _
  $region6: #{mlp_forward.2} parent=0 // loop_footer
    %s15 = sadd.s32 1, %s11
  $region7: #{mlp_forward.2} parent=0 // loop_footer_branch
    %10 = sbr.rel target = $region3
  $region8: #{mlp_forward.2} parent=0 // loop_exit
    _

</llo_original>
